<compile_context>
chip_gen: v7x
topology: tpu7x:2x2x1
jax: 0.10.0
libtpu: 0.0.40
codegen_flags: <defaults>
</compile_context>

<pallas_src>
import functools

import jax
import jax.numpy as jnp
from jax.experimental import pallas as pl
from jax.experimental.pallas import tpu as pltpu


CFG = dict(in_ch=3, image=16, patch=8, width=32, layers=2, heads=4, embed_dim=16)


# ----------------------------------------------------------------------------
# In-kernel helpers
# ----------------------------------------------------------------------------

def _ln(x, g, b, eps=1e-5):
    """Row-wise LayerNorm over the last axis, f32 math (PyTorch eps=1e-5)."""
    x = x.astype(jnp.float32)
    mu = jnp.mean(x, axis=-1, keepdims=True)
    var = jnp.mean((x - mu) * (x - mu), axis=-1, keepdims=True)
    return (x - mu) * jax.lax.rsqrt(var + eps) * g + b


# ----------------------------------------------------------------------------
# Kernel 1: patch-embed matmul + class token + positional embedding + ln_pre
# ----------------------------------------------------------------------------

def _embed_kernel(patches_ref, wconv_ref, cls_ref, pos_ref, g_ref, b_ref, o_ref):
    patches = patches_ref[0]                                   # [P, C*P*P]
    emb = jnp.dot(patches, wconv_ref[...],
                  preferred_element_type=jnp.float32)          # conv1 as matmul
    pos = pos_ref[...]                                         # [S, W]
    g = g_ref[...]
    b = b_ref[...]
    cls_tok = cls_ref[...] + pos[0:1, :]                       # [1, W]
    patch_tok = emb + pos[1:, :]                               # [P, W]
    o_ref[0, 0:1, :] = _ln(cls_tok, g, b).astype(o_ref.dtype)
    o_ref[0, 1:, :] = _ln(patch_tok, g, b).astype(o_ref.dtype)


def embed_ln_pre(patches, wconv, cls, pos, gamma, beta):
    B, P, CPP = patches.shape
    S, W = pos.shape
    return pl.pallas_call(
        _embed_kernel,
        out_shape=jax.ShapeDtypeStruct((B, S, W), jnp.float32),
        grid=(B,),
        in_specs=[pl.BlockSpec((1, P, CPP), lambda bidx: (bidx, 0, 0)),
                  pl.BlockSpec((CPP, W), lambda bidx: (0, 0)),
                  pl.BlockSpec((1, W), lambda bidx: (0, 0)),
                  pl.BlockSpec((S, W), lambda bidx: (0, 0)),
                  pl.BlockSpec((1, W), lambda bidx: (0, 0)),
                  pl.BlockSpec((1, W), lambda bidx: (0, 0))],
        out_specs=pl.BlockSpec((1, S, W), lambda bidx: (bidx, 0, 0)),
        compiler_params=pltpu.CompilerParams(dimension_semantics=("parallel",)),
    )(patches, wconv, cls, pos, gamma, beta)


# ----------------------------------------------------------------------------
# Kernel 2: one full transformer block (LN + MHSA + residual + LN + MLP + res.)
# ----------------------------------------------------------------------------

def _block_kernel(x_ref, g1_ref, b1_ref, wqkv_ref, bqkv_ref, wo_ref, bo_ref,
                  g2_ref, b2_ref, wfc_ref, bfc_ref, wpr_ref, bpr_ref, o_ref,
                  *, heads, scale):
    x = x_ref[0].astype(jnp.float32)                           # [S, W]
    W = x.shape[-1]
    dh = W // heads

    # --- attention: ln_1 fused, per-head softmax(QK^T)V, out-proj + residual
    h = _ln(x, g1_ref[...], b1_ref[...])
    qkv = jnp.dot(h, wqkv_ref[...],
                  preferred_element_type=jnp.float32) + bqkv_ref[...]  # [S, 3W]
    attn_proj = None
    for hd in range(heads):
        lo = hd * dh
        qh = qkv[:, lo:lo + dh]
        kh = qkv[:, W + lo:W + lo + dh]
        vh = qkv[:, 2 * W + lo:2 * W + lo + dh]
        s = jnp.dot(qh, kh.T, preferred_element_type=jnp.float32) * scale
        s = s - jnp.max(s, axis=-1, keepdims=True)
        p = jnp.exp(s)
        p = p * pl.reciprocal(jnp.sum(p, axis=-1, keepdims=True), approx=True)
        oh = jnp.dot(p, vh, preferred_element_type=jnp.float32)        # [S, dh]
        # accumulate each head straight into the out-projection: no narrow
        # per-head tensor is ever stored, result stays lane-dense [S, W].
        contrib = jnp.dot(oh, wo_ref[lo:lo + dh, :],
                          preferred_element_type=jnp.float32)
        attn_proj = contrib if attn_proj is None else attn_proj + contrib
    x = x + attn_proj + bo_ref[...]                            # fused residual

    # --- MLP: ln_2 fused, QuickGELU fused, residual fused
    h = _ln(x, g2_ref[...], b2_ref[...])
    h = jnp.dot(h, wfc_ref[...],
                preferred_element_type=jnp.float32) + bfc_ref[...]
    h = h * jax.nn.sigmoid(1.702 * h)                          # QuickGELU
    x = x + jnp.dot(h, wpr_ref[...],
                    preferred_element_type=jnp.float32) + bpr_ref[...]

    o_ref[0] = x.astype(o_ref.dtype)


def transformer_block(x, blk, heads):
    B, S, W = x.shape
    dh = W // heads
    scale = 1.0 / (float(dh) ** 0.5)
    tok_spec = pl.BlockSpec((1, S, W), lambda bidx: (bidx, 0, 0))

    def w_spec(a):
        return pl.BlockSpec(a.shape, lambda bidx: (0, 0))

    args = (blk['ln_1_g'], blk['ln_1_b'],
            blk['attn_in_w'], blk['attn_in_b'],
            blk['attn_out_w'], blk['attn_out_b'],
            blk['ln_2_g'], blk['ln_2_b'],
            blk['mlp_fc_w'], blk['mlp_fc_b'],
            blk['mlp_proj_w'], blk['mlp_proj_b'])
    return pl.pallas_call(
        functools.partial(_block_kernel, heads=heads, scale=scale),
        out_shape=jax.ShapeDtypeStruct((B, S, W), jnp.float32),
        grid=(B,),
        in_specs=[tok_spec] + [w_spec(a) for a in args],
        out_specs=tok_spec,
        compiler_params=pltpu.CompilerParams(dimension_semantics=("parallel",)),
    )(x, *args)


# ----------------------------------------------------------------------------
# Kernel 3: ln_post + projection head + L2 normalize (feature & style together)
# ----------------------------------------------------------------------------

def _head_kernel(x_ref, g_ref, b_ref, proj_ref, feat_ref, sty_ref):
    f = _ln(x_ref[...], g_ref[...], b_ref[...])                # ln_post(class tok)
    feat_ref[...] = f.astype(feat_ref.dtype)
    y = jnp.dot(f, proj_ref[...], preferred_element_type=jnp.float32)
    nrm = jnp.sqrt(jnp.sum(y * y, axis=-1, keepdims=True))
    sty_ref[...] = (y / jnp.maximum(nrm, 1e-12)).astype(sty_ref.dtype)


def _spec2(shape):
    return pl.BlockSpec(shape, lambda: (0, 0))


def head_project(cls2d, gamma, beta, proj):
    B, W = cls2d.shape
    E = proj.shape[1]
    return pl.pallas_call(
        _head_kernel,
        out_shape=(jax.ShapeDtypeStruct((B, W), jnp.float32),
                   jax.ShapeDtypeStruct((B, E), jnp.float32)),
        in_specs=[_spec2((B, W)), _spec2((1, W)), _spec2((1, W)), _spec2((W, E))],
        out_specs=(_spec2((B, W)), _spec2((B, E))),
    )(cls2d, gamma, beta, proj)


# ----------------------------------------------------------------------------
# Synthetic CLIP ViT parameters.  All weights pre-transposed to [in, out] once
# at init so the forward pass never emits an XLA transpose.
# TODO(synk): build_model / pretrained CLIP weights unavailable; synthetic
# ViT config stands in for the real backbone.
# ----------------------------------------------------------------------------

def init_params(key, cfg=CFG):
    width, patch, in_ch, E = cfg['width'], cfg['patch'], cfg['in_ch'], cfg['embed_dim']
    grid = cfg['image'] // patch
    n_tok = grid * grid + 1
    kit = iter(jax.random.split(key, 8 + 8 * cfg['layers']))

    def nrm(shape, scale=0.02):
        return scale * jax.random.normal(next(kit), shape, jnp.float32)

    conv_w_oihw = nrm((width, in_ch, patch, patch))   # Conv2d weight, bias=False
    proj = nrm((width, E))                            # backbone.proj
    params = dict(
        # [C*P*P, width], (c, kh, kw) flattening order -- matches OIHW conv.
        conv1_w_t=conv_w_oihw.reshape(width, -1).T,
        class_embedding=nrm((width,)).reshape(1, width),
        positional_embedding=nrm((n_tok, width)),
        ln_pre_g=jnp.ones((1, width)), ln_pre_b=jnp.zeros((1, width)),
        ln_post_g=jnp.ones((1, width)), ln_post_b=jnp.zeros((1, width)),
        # last_layer_style / last_layer_content: deep copies of the same proj.
        proj_style=proj,
        proj_content=proj,
        blocks=[],
    )
    for _ in range(cfg['layers']):
        params['blocks'].append(dict(
            ln_1_g=jnp.ones((1, width)), ln_1_b=jnp.zeros((1, width)),
            attn_in_w=nrm((3 * width, width)).T,      # stored [W, 3W]
            attn_in_b=jnp.zeros((1, 3 * width)),
            attn_out_w=nrm((width, width)).T,         # stored [W, W] (in,out)
            attn_out_b=jnp.zeros((1, width)),
            ln_2_g=jnp.ones((1, width)), ln_2_b=jnp.zeros((1, width)),
            mlp_fc_w=nrm((4 * width, width)).T,       # stored [W, 4W]
            mlp_fc_b=jnp.zeros((1, 4 * width)),
            mlp_proj_w=nrm((width, 4 * width)).T,     # stored [4W, W]
            mlp_proj_b=jnp.zeros((1, width)),
        ))
    return params


# ----------------------------------------------------------------------------
# Forward pass
# ----------------------------------------------------------------------------

def _patchify_nchw(x, patch):
    """NCHW image -> [B, n_patches, C*P*P] with (c, kh, kw) flattening order."""
    B, C, H, W = x.shape
    gh, gw = H // patch, W // patch
    x = x.reshape(B, C, gh, patch, gw, patch)
    x = x.transpose(0, 2, 4, 1, 3, 5)                 # B, gh, gw, C, ph, pw
    return x.reshape(B, gh * gw, C * patch * patch)


def _vit_backbone(params, x_nchw, cfg=CFG):
    patches = _patchify_nchw(x_nchw, cfg['patch'])
    x = embed_ln_pre(patches, params['conv1_w_t'], params['class_embedding'],
                     params['positional_embedding'],
                     params['ln_pre_g'], params['ln_pre_b'])      # [B, S, W]
    for blk in params['blocks']:
        x = transformer_block(x, blk, cfg['heads'])
    return x                                                      # residual stream


def csd_clip_forward(params, input_data, alpha=None, cfg=CFG):
    """Mirrors CSD_CLIP.forward (multi_layer_feats=False branch)."""
    x = _vit_backbone(params, input_data, cfg)                    # [B, S, W]
    cls2d = x[:, 0, :]                                            # only_global_token
    feat2d, sty2d = head_project(cls2d, params['ln_post_g'], params['ln_post_b'],
                                 params['proj_style'])
    B, W = feat2d.shape
    feature = feat2d.reshape(B, 1, W)                             # 3-D, dim=2 norm
    style = sty2d.reshape(B, 1, -1)
    # ReverseLayerF is identity in the forward pass, and last_layer_content is a
    # deep copy of the identical proj tensor -> content == style bit-for-bit.
    if params['proj_content'] is params['proj_style']:
        content = style
    else:
        _, con2d = head_project(cls2d, params['ln_post_g'], params['ln_post_b'],
                                params['proj_content'])
        content = con2d.reshape(B, 1, -1)
    return {'feature': feature, 'content': content, 'style': style}


# ----------------------------------------------------------------------------

if __name__ == "__main__":
    key = jax.random.PRNGKey(0)
    kparam, kdata = jax.random.split(key)
    params = init_params(kparam)
    # NCHW input, like the PyTorch module
    x = jax.random.normal(kdata, (2, CFG['in_ch'], CFG['image'], CFG['image']),
                          jnp.float32)
    out = csd_clip_forward(params, x, alpha=1.0)
    jax.block_until_ready(out)
    assert out['feature'].shape == (2, 1, CFG['width'])
    assert out['style'].shape == (2, 1, CFG['embed_dim'])
    assert out['content'].shape == (2, 1, CFG['embed_dim'])
    print("KERNEL_OK")
</pallas_src>

<mosaic_0001>
module attributes {stable_mosaic.version = 11 : i64} {
  func.func @_embed_kernel(%arg0: i32, %arg1: memref<1x4x192xf32, #tpu.memory_space<vmem>>, %arg2: memref<192x32xf32, #tpu.memory_space<vmem>>, %arg3: memref<1x32xf32, #tpu.memory_space<vmem>>, %arg4: memref<5x32xf32, #tpu.memory_space<vmem>>, %arg5: memref<1x32xf32, #tpu.memory_space<vmem>>, %arg6: memref<1x32xf32, #tpu.memory_space<vmem>>, %arg7: memref<1x5x32xf32, #tpu.memory_space<vmem>>) attributes {dimension_semantics = [#tpu.dimension_semantics<parallel>], iteration_bounds = array<i64: 2>, scalar_prefetch = 0 : i64, scratch_operands = 0 : i64, tpu.core_type = #tpu.core_type<tc>, window_params = [{transform_indices = @transform_0, window_bounds = array<i64: 1, 4, 192>}, {pipeline_mode = #tpu.pipeline_mode<synchronous>, transform_indices = @transform_1, window_bounds = array<i64: 192, 32>}, {pipeline_mode = #tpu.pipeline_mode<synchronous>, transform_indices = @transform_2, window_bounds = array<i64: 1, 32>}, {pipeline_mode = #tpu.pipeline_mode<synchronous>, transform_indices = @transform_3, window_bounds = array<i64: 5, 32>}, {pipeline_mode = #tpu.pipeline_mode<synchronous>, transform_indices = @transform_4, window_bounds = array<i64: 1, 32>}, {pipeline_mode = #tpu.pipeline_mode<synchronous>, transform_indices = @transform_5, window_bounds = array<i64: 1, 32>}, {transform_indices = @transform_6, window_bounds = array<i64: 1, 5, 32>}]} {
    %c0 = arith.constant 0 : index
    %c0_0 = arith.constant 0 : index
    %c0_1 = arith.constant 0 : index
    %0 = vector.load %arg1[%c0, %c0_0, %c0_1] : memref<1x4x192xf32, #tpu.memory_space<vmem>>, vector<1x4x192xf32>
    %1 = vector.shape_cast %0 : vector<1x4x192xf32> to vector<4x192xf32>
    %c0_2 = arith.constant 0 : index
    %c0_3 = arith.constant 0 : index
    %2 = vector.load %arg2[%c0_2, %c0_3] : memref<192x32xf32, #tpu.memory_space<vmem>>, vector<192x32xf32>
    %cst = arith.constant dense<0.000000e+00> : vector<4x32xf32>
    %3 = tpu.matmul %1, %2, %cst {dimension_numbers = #tpu.dot_dimension_numbers<[1], [0], [0], [1], [0, 0, 1, 1], [], []>} : vector<4x192xf32>, vector<192x32xf32>, vector<4x32xf32> -> vector<4x32xf32>
    %c0_4 = arith.constant 0 : index
    %c0_5 = arith.constant 0 : index
    %4 = vector.load %arg4[%c0_4, %c0_5] : memref<5x32xf32, #tpu.memory_space<vmem>>, vector<5x32xf32>
    %c0_6 = arith.constant 0 : index
    %c0_7 = arith.constant 0 : index
    %5 = vector.load %arg5[%c0_6, %c0_7] : memref<1x32xf32, #tpu.memory_space<vmem>>, vector<1x32xf32>
    %c0_8 = arith.constant 0 : index
    %c0_9 = arith.constant 0 : index
    %6 = vector.load %arg6[%c0_8, %c0_9] : memref<1x32xf32, #tpu.memory_space<vmem>>, vector<1x32xf32>
    %c0_10 = arith.constant 0 : index
    %c0_11 = arith.constant 0 : index
    %7 = vector.load %arg3[%c0_10, %c0_11] : memref<1x32xf32, #tpu.memory_space<vmem>>, vector<1x32xf32>
    %8 = vector.extract_strided_slice %4 {offsets = [0, 0], sizes = [1, 32], strides = [1, 1]} : vector<5x32xf32> to vector<1x32xf32>
    %9 = arith.addf %7, %8 : vector<1x32xf32>
    %10 = vector.extract_strided_slice %4 {offsets = [1, 0], sizes = [4, 32], strides = [1, 1]} : vector<5x32xf32> to vector<4x32xf32>
    %11 = arith.addf %3, %10 : vector<4x32xf32>
    %cst_12 = arith.constant dense<0.000000e+00> : vector<1xf32>
    %12 = vector.multi_reduction <add>, %9, %cst_12 [1] : vector<1x32xf32> to vector<1xf32>
    %13 = vector.shape_cast %12 : vector<1xf32> to vector<1x1xf32>
    %cst_13 = arith.constant 3.200000e+01 : f32
    %14 = vector.broadcast %cst_13 : f32 to vector<1x1xf32>
    %15 = arith.divf %13, %14 : vector<1x1xf32>
    %16 = vector.broadcast %15 : vector<1x1xf32> to vector<1x32xf32>
    %17 = arith.subf %9, %16 : vector<1x32xf32>
    %18 = vector.broadcast %15 : vector<1x1xf32> to vector<1x32xf32>
    %19 = arith.subf %9, %18 : vector<1x32xf32>
    %20 = arith.mulf %17, %19 : vector<1x32xf32>
    %cst_14 = arith.constant dense<0.000000e+00> : vector<1xf32>
    %21 = vector.multi_reduction <add>, %20, %cst_14 [1] : vector<1x32xf32> to vector<1xf32>
    %22 = vector.shape_cast %21 : vector<1xf32> to vector<1x1xf32>
    %cst_15 = arith.constant 3.200000e+01 : f32
    %23 = vector.broadcast %cst_15 : f32 to vector<1x1xf32>
    %24 = arith.divf %22, %23 : vector<1x1xf32>
    %25 = vector.broadcast %15 : vector<1x1xf32> to vector<1x32xf32>
    %26 = arith.subf %9, %25 : vector<1x32xf32>
    %cst_16 = arith.constant 9.99999974E-6 : f32
    %27 = vector.broadcast %cst_16 : f32 to vector<1x1xf32>
    %28 = arith.addf %24, %27 : vector<1x1xf32>
    %29 = math.rsqrt %28 : vector<1x1xf32>
    %30 = vector.broadcast %29 : vector<1x1xf32> to vector<1x32xf32>
    %31 = arith.mulf %26, %30 : vector<1x32xf32>
    %32 = arith.mulf %31, %5 : vector<1x32xf32>
    %33 = arith.addf %32, %6 : vector<1x32xf32>
    %c0_17 = arith.constant 0 : index
    %c0_18 = arith.constant 0 : index
    %c0_19 = arith.constant 0 : index
    %34 = vector.load %arg7[%c0_17, %c0_18, %c0_19] : memref<1x5x32xf32, #tpu.memory_space<vmem>>, vector<1x1x32xf32>
    %35 = vector.shape_cast %34 : vector<1x1x32xf32> to vector<1x32xf32>
    %36 = vector.shape_cast %33 : vector<1x32xf32> to vector<1x1x32xf32>
    tpu.vector_store %arg7[%c0_17, %c0_18, %c0_19], %36 {strides = array<i32>} : memref<1x5x32xf32, #tpu.memory_space<vmem>>, vector<1x1x32xf32>,
    %cst_20 = arith.constant dense<0.000000e+00> : vector<4xf32>
    %37 = vector.multi_reduction <add>, %11, %cst_20 [1] : vector<4x32xf32> to vector<4xf32>
    %38 = vector.shape_cast %37 : vector<4xf32> to vector<4x1xf32>
    %cst_21 = arith.constant 3.200000e+01 : f32
    %39 = vector.broadcast %cst_21 : f32 to vector<4x1xf32>
    %40 = arith.divf %38, %39 : vector<4x1xf32>
    %41 = vector.broadcast %40 : vector<4x1xf32> to vector<4x32xf32>
    %42 = arith.subf %11, %41 : vector<4x32xf32>
    %43 = vector.broadcast %40 : vector<4x1xf32> to vector<4x32xf32>
    %44 = arith.subf %11, %43 : vector<4x32xf32>
    %45 = arith.mulf %42, %44 : vector<4x32xf32>
    %cst_22 = arith.constant dense<0.000000e+00> : vector<4xf32>
    %46 = vector.multi_reduction <add>, %45, %cst_22 [1] : vector<4x32xf32> to vector<4xf32>
    %47 = vector.shape_cast %46 : vector<4xf32> to vector<4x1xf32>
    %cst_23 = arith.constant 3.200000e+01 : f32
    %48 = vector.broadcast %cst_23 : f32 to vector<4x1xf32>
    %49 = arith.divf %47, %48 : vector<4x1xf32>
    %50 = vector.broadcast %40 : vector<4x1xf32> to vector<4x32xf32>
    %51 = arith.subf %11, %50 : vector<4x32xf32>
    %cst_24 = arith.constant 9.99999974E-6 : f32
    %52 = vector.broadcast %cst_24 : f32 to vector<4x1xf32>
    %53 = arith.addf %49, %52 : vector<4x1xf32>
    %54 = math.rsqrt %53 : vector<4x1xf32>
    %55 = vector.broadcast %54 : vector<4x1xf32> to vector<4x32xf32>
    %56 = arith.mulf %51, %55 : vector<4x32xf32>
    %57 = vector.broadcast %5 : vector<1x32xf32> to vector<4x32xf32>
    %58 = arith.mulf %56, %57 : vector<4x32xf32>
    %59 = vector.broadcast %6 : vector<1x32xf32> to vector<4x32xf32>
    %60 = arith.addf %58, %59 : vector<4x32xf32>
    %c0_25 = arith.constant 0 : index
    %c1 = arith.constant 1 : index
    %c0_26 = arith.constant 0 : index
    %61 = vector.load %arg7[%c0_25, %c1, %c0_26] : memref<1x5x32xf32, #tpu.memory_space<vmem>>, vector<1x4x32xf32>
    %62 = vector.shape_cast %61 : vector<1x4x32xf32> to vector<4x32xf32>
    %63 = vector.shape_cast %60 : vector<4x32xf32> to vector<1x4x32xf32>
    tpu.vector_store %arg7[%c0_25, %c1, %c0_26], %63 {strides = array<i32>} : memref<1x5x32xf32, #tpu.memory_space<vmem>>, vector<1x4x32xf32>,
    return
  }
  func.func @transform_0(%arg0: i32) -> (i32, i32, i32) {
    %c0_i32 = arith.constant 0 : i32
    %c0_i32_0 = arith.constant 0 : i32
    %c0_i32_1 = arith.constant 0 : i32
    return %arg0, %c0_i32, %c0_i32_0 : i32, i32, i32
  }
  func.func @transform_1(%arg0: i32) -> (i32, i32) {
    %c0_i32 = arith.constant 0 : i32
    %c0_i32_0 = arith.constant 0 : i32
    %c0_i32_1 = arith.constant 0 : i32
    return %c0_i32, %c0_i32_0 : i32, i32
  }
  func.func @transform_2(%arg0: i32) -> (i32, i32) {
    %c0_i32 = arith.constant 0 : i32
    %c0_i32_0 = arith.constant 0 : i32
    %c0_i32_1 = arith.constant 0 : i32
    return %c0_i32, %c0_i32_0 : i32, i32
  }
  func.func @transform_3(%arg0: i32) -> (i32, i32) {
    %c0_i32 = arith.constant 0 : i32
    %c0_i32_0 = arith.constant 0 : i32
    %c0_i32_1 = arith.constant 0 : i32
    return %c0_i32, %c0_i32_0 : i32, i32
  }
  func.func @transform_4(%arg0: i32) -> (i32, i32) {
    %c0_i32 = arith.constant 0 : i32
    %c0_i32_0 = arith.constant 0 : i32
    %c0_i32_1 = arith.constant 0 : i32
    return %c0_i32, %c0_i32_0 : i32, i32
  }
  func.func @transform_5(%arg0: i32) -> (i32, i32) {
    %c0_i32 = arith.constant 0 : i32
    %c0_i32_0 = arith.constant 0 : i32
    %c0_i32_1 = arith.constant 0 : i32
    return %c0_i32, %c0_i32_0 : i32, i32
  }
  func.func @transform_6(%arg0: i32) -> (i32, i32, i32) {
    %c0_i32 = arith.constant 0 : i32
    %c0_i32_0 = arith.constant 0 : i32
    %c0_i32_1 = arith.constant 0 : i32
    return %arg0, %c0_i32, %c0_i32_0 : i32, i32, i32
  }
}

</mosaic_0001>

<llo_original>
// kernel: tpu_custom_call.1
$region0: #{tpu_custom_call.1}
  #allocation0 [shape = 'u32[]', space=smem, size = 0x4, offset = 0x4, fixed_abs, tag = 'smem constant byte address 0x4 - core index']
  #allocation1 [shape = 'u32[144,128]{1,0:T(1,128)}', space=vmem, size = 0x12000, scoped, tag = 'internal scratch']
  %s0 = inlined_call_operand.vmem [shape: f32[2,4,192], index: 0, kind: input, shape index: {}]
  %s1 = inlined_call_operand.vmem [shape: f32[192,32], index: 1, kind: input, shape index: {}]
  %s2 = inlined_call_operand.vmem [shape: f32[1,32], index: 2, kind: input, shape index: {}]
  %s3 = inlined_call_operand.vmem [shape: f32[5,32], index: 3, kind: input, shape index: {}]
  %s4 = inlined_call_operand.vmem [shape: f32[1,32], index: 4, kind: input, shape index: {}]
  %s5 = inlined_call_operand.vmem [shape: f32[1,32], index: 5, kind: input, shape index: {}]
  %s6 = inlined_call_operand.vmem [shape: f32[2,5,32], index: 6, kind: output, shape index: {}]
  %s7 = sld [smem:[#allocation0]]
  $region57: #{tpu_custom_call.1} parent=0
    _
  %s9 = ssub.s32 1, %s7
  %s10 = scalar_select 0, %s9, %s7
  loop: start=0, step=1, limit=4
  $region2: #{tpu_custom_call.1} parent=0 // loop_pre_header
    _
  $region3: #{tpu_custom_call.1} parent=0 // loop_header
    %s12 = sphi 0, %s16
    %p13 = scmp.ge.s32.totalorder %s12, 4
    %s22 = sphi 0, %s24
    %s25 = sphi 0, %s22
    %s26 = sphi 0, %s25
    %s42 = sphi 0, %s26
    %s46 = sphi 0, %s46
    %s48 = sphi 0, %s46
    %s49 = sphi 0, %s48
    %s63 = sphi 0, %s49
    %s67 = sphi 0, %s67
    %s69 = sphi 0, %s67
    %s70 = sphi 0, %s69
    %s84 = sphi 0, %s70
    %s88 = sphi 0, %s88
    %s90 = sphi 0, %s88
    %s91 = sphi 0, %s90
    %s105 = sphi 0, %s91
    %s109 = sphi 0, %s109
    %s111 = sphi 0, %s109
    %s112 = sphi 0, %s111
    %s126 = sphi 0, %s112
    %s130 = sphi 0, %s130
    %s132 = sphi 0, %s130
    %s133 = sphi 0, %s132
    %s147 = sphi 0, %s133
    %s153 = sphi 0, %s155
    %s156 = sphi 0, %s153
    %s157 = sphi 0, %s156
    %s173 = sphi 0, %s157
  $region4: #{tpu_custom_call.1} parent=0 // loop_header_branch
    %15 = sbr.rel (%p13) target = $region8
  $region5: #{tpu_custom_call.1} parent=0 // loop_body
    %s17 = ssub.s32 %s12, 1
    %s18 = ssub.s32 %s12, 2
    %s19 = sadd.s32 %s12, 1
    %s20 = ssub.s32 %s12, %s19
    %p21 = scmp.eq.s32.totalorder %s20, 0
    %s23 = sadd.s32 %s22, 1
    %s24 = scalar_select %p21, %s22, %s23
    %p27 = pneg %p21
    %p28 = scmp.eq.s32.totalorder %s12, 1
    %p29 = por %p27, %p28
    %p30 = scmp.ne.s32.totalorder %s22, %s25
    %p31 = scmp.eq.s32.totalorder %s12, 0
    %p32 = por %p30, %p31
    %p33 = scmp.ne.s32.totalorder %s22, %s25
    %p34 = scmp.eq.s32.totalorder %s17, 1
    %p35 = por %p33, %p34
    %p36 = scmp.ne.s32.totalorder %s25, %s26
    %p37 = scmp.eq.s32.totalorder %s17, 0
    %p38 = por %p36, %p37
    %p39 = scmp.ne.s32.totalorder %s25, %s26
    %p40 = scmp.eq.s32.totalorder %s18, 1
    %p41 = por %p39, %p40
    %p43 = scmp.ne.s32.totalorder %s26, %s42
    %p44 = scmp.eq.s32.totalorder %s18, 0
    %p45 = por %p43, %p44
    %s47 = sadd.s32 %s46, 1
    %p50 = scmp.eq.s32.totalorder %s12, 1
    %p51 = scmp.ne.s32.totalorder %s46, %s48
    %p52 = scmp.eq.s32.totalorder %s12, 0
    %p53 = por %p51, %p52
    %p54 = scmp.ne.s32.totalorder %s46, %s48
    %p55 = scmp.eq.s32.totalorder %s17, 1
    %p56 = por %p54, %p55
    %p57 = scmp.ne.s32.totalorder %s48, %s49
    %p58 = scmp.eq.s32.totalorder %s17, 0
    %p59 = por %p57, %p58
    %p60 = scmp.ne.s32.totalorder %s48, %s49
    %p61 = scmp.eq.s32.totalorder %s18, 1
    %p62 = por %p60, %p61
    %p64 = scmp.ne.s32.totalorder %s49, %s63
    %p65 = scmp.eq.s32.totalorder %s18, 0
    %p66 = por %p64, %p65
    %s68 = sadd.s32 %s67, 1
    %p71 = scmp.eq.s32.totalorder %s12, 1
    %p72 = scmp.ne.s32.totalorder %s67, %s69
    %p73 = scmp.eq.s32.totalorder %s12, 0
    %p74 = por %p72, %p73
    %p75 = scmp.ne.s32.totalorder %s67, %s69
    %p76 = scmp.eq.s32.totalorder %s17, 1
    %p77 = por %p75, %p76
    %p78 = scmp.ne.s32.totalorder %s69, %s70
    %p79 = scmp.eq.s32.totalorder %s17, 0
    %p80 = por %p78, %p79
    %p81 = scmp.ne.s32.totalorder %s69, %s70
    %p82 = scmp.eq.s32.totalorder %s18, 1
    %p83 = por %p81, %p82
    %p85 = scmp.ne.s32.totalorder %s70, %s84
    %p86 = scmp.eq.s32.totalorder %s18, 0
    %p87 = por %p85, %p86
    %s89 = sadd.s32 %s88, 1
    %p92 = scmp.eq.s32.totalorder %s12, 1
    %p93 = scmp.ne.s32.totalorder %s88, %s90
    %p94 = scmp.eq.s32.totalorder %s12, 0
    %p95 = por %p93, %p94
    %p96 = scmp.ne.s32.totalorder %s88, %s90
    %p97 = scmp.eq.s32.totalorder %s17, 1
    %p98 = por %p96, %p97
    %p99 = scmp.ne.s32.totalorder %s90, %s91
    %p100 = scmp.eq.s32.totalorder %s17, 0
    %p101 = por %p99, %p100
    %p102 = scmp.ne.s32.totalorder %s90, %s91
    %p103 = scmp.eq.s32.totalorder %s18, 1
    %p104 = por %p102, %p103
    %p106 = scmp.ne.s32.totalorder %s91, %s105
    %p107 = scmp.eq.s32.totalorder %s18, 0
    %p108 = por %p106, %p107
    %s110 = sadd.s32 %s109, 1
    %p113 = scmp.eq.s32.totalorder %s12, 1
    %p114 = scmp.ne.s32.totalorder %s109, %s111
    %p115 = scmp.eq.s32.totalorder %s12, 0
    %p116 = por %p114, %p115
    %p117 = scmp.ne.s32.totalorder %s109, %s111
    %p118 = scmp.eq.s32.totalorder %s17, 1
    %p119 = por %p117, %p118
    %p120 = scmp.ne.s32.totalorder %s111, %s112
    %p121 = scmp.eq.s32.totalorder %s17, 0
    %p122 = por %p120, %p121
    %p123 = scmp.ne.s32.totalorder %s111, %s112
    %p124 = scmp.eq.s32.totalorder %s18, 1
    %p125 = por %p123, %p124
    %p127 = scmp.ne.s32.totalorder %s112, %s126
    %p128 = scmp.eq.s32.totalorder %s18, 0
    %p129 = por %p127, %p128
    %s131 = sadd.s32 %s130, 1
    %p134 = scmp.eq.s32.totalorder %s12, 1
    %p135 = scmp.ne.s32.totalorder %s130, %s132
    %p136 = scmp.eq.s32.totalorder %s12, 0
    %p137 = por %p135, %p136
    %p138 = scmp.ne.s32.totalorder %s130, %s132
    %p139 = scmp.eq.s32.totalorder %s17, 1
    %p140 = por %p138, %p139
    %p141 = scmp.ne.s32.totalorder %s132, %s133
    %p142 = scmp.eq.s32.totalorder %s17, 0
    %p143 = por %p141, %p142
    %p144 = scmp.ne.s32.totalorder %s132, %s133
    %p145 = scmp.eq.s32.totalorder %s18, 1
    %p146 = por %p144, %p145
    %p148 = scmp.ne.s32.totalorder %s133, %s147
    %p149 = scmp.eq.s32.totalorder %s18, 0
    %p150 = por %p148, %p149
    %s151 = ssub.s32 %s12, %s19
    %p152 = scmp.eq.s32.totalorder %s151, 0
    %s154 = sadd.s32 %s153, 1
    %s155 = scalar_select %p152, %s153, %s154
    %p158 = pneg %p152
    %p159 = scmp.eq.s32.totalorder %s12, 1
    %p160 = por %p158, %p159
    %p161 = scmp.ne.s32.totalorder %s153, %s156
    %p162 = scmp.eq.s32.totalorder %s12, 0
    %p163 = por %p161, %p162
    %p164 = scmp.ne.s32.totalorder %s153, %s156
    %p165 = scmp.eq.s32.totalorder %s17, 1
    %p166 = por %p164, %p165
    %p167 = scmp.ne.s32.totalorder %s156, %s157
    %p168 = scmp.eq.s32.totalorder %s17, 0
    %p169 = por %p167, %p168
    %p170 = scmp.ne.s32.totalorder %s156, %s157
    %p171 = scmp.eq.s32.totalorder %s18, 1
    %p172 = por %p170, %p171
    %p174 = scmp.ne.s32.totalorder %s157, %s173
    %p175 = scmp.eq.s32.totalorder %s18, 0
    %p176 = por %p174, %p175
    %p177 = scmp.le.s32.totalorder 1, %s12
    %p178 = scmp.lt.s32.totalorder %s12, 3
    %p179 = pnand %p177, %p178
    %p180 = pneg %p179
    // Predicated region
    $region9: #{tpu_custom_call.1} parent=5 // pred_check
      _
    $region10: #{tpu_custom_call.1} parent=5 // pred_check_branch
      %182 = sbr.rel (%p179) target = $region12
    $region11: #{tpu_custom_call.1} parent=5 // pred_region
      %s183 = ssub.s32 %s12, 1
      // Predicated region
      $region13: #{tpu_custom_call.1} parent=11 // pred_check
        %p184 = pneg %p59
      $region14: #{tpu_custom_call.1} parent=11 // pred_check_branch
        %186 = sbr.rel (%p184) target = $region16
      $region15: #{tpu_custom_call.1} parent=11 // pred_region
        _
      $region16: #{tpu_custom_call.1} parent=11 // pred_fallthru
        _
      // Predicated region
      $region17: #{tpu_custom_call.1} parent=11 // pred_check
        %p187 = pneg %p80
      $region18: #{tpu_custom_call.1} parent=11 // pred_check_branch
        %189 = sbr.rel (%p187) target = $region20
      $region19: #{tpu_custom_call.1} parent=11 // pred_region
        _
      $region20: #{tpu_custom_call.1} parent=11 // pred_fallthru
        _
      // Predicated region
      $region21: #{tpu_custom_call.1} parent=11 // pred_check
        %p190 = pneg %p101
      $region22: #{tpu_custom_call.1} parent=11 // pred_check_branch
        %192 = sbr.rel (%p190) target = $region24
      $region23: #{tpu_custom_call.1} parent=11 // pred_region
        _
      $region24: #{tpu_custom_call.1} parent=11 // pred_fallthru
        _
      // Predicated region
      $region25: #{tpu_custom_call.1} parent=11 // pred_check
        %p193 = pneg %p122
      $region26: #{tpu_custom_call.1} parent=11 // pred_check_branch
        %195 = sbr.rel (%p193) target = $region28
      $region27: #{tpu_custom_call.1} parent=11 // pred_region
        _
      $region28: #{tpu_custom_call.1} parent=11 // pred_fallthru
        _
      // Predicated region
      $region29: #{tpu_custom_call.1} parent=11 // pred_check
        %p196 = pneg %p143
      $region30: #{tpu_custom_call.1} parent=11 // pred_check_branch
        %198 = sbr.rel (%p196) target = $region32
      $region31: #{tpu_custom_call.1} parent=11 // pred_region
        _
      $region32: #{tpu_custom_call.1} parent=11 // pred_fallthru
        _
    $region12: #{tpu_custom_call.1} parent=5 // pred_fallthru
      _
    %p199 = scmp.lt.s32.totalorder %s12, 2
    // Predicated region
    $region33: #{tpu_custom_call.1} parent=5 // pred_check
      %p200 = pneg %p199
    $region34: #{tpu_custom_call.1} parent=5 // pred_check_branch
      %202 = sbr.rel (%p200) target = $region36
    $region35: #{tpu_custom_call.1} parent=5 // pred_region
      // Predicated region
      $region37: #{tpu_custom_call.1} parent=35 // pred_check
        %p203 = pneg %p32
      $region38: #{tpu_custom_call.1} parent=35 // pred_check_branch
        %205 = sbr.rel (%p203) target = $region40
      $region39: #{tpu_custom_call.1} parent=35 // pred_region
        %p206 = scmp.lt.s32.totalorder %s12, 1
        %s207 = scalar_select %p206, %s12, 1
        %s208 = smul.addr %s207, 2
        %s209 = smul.addr %s208, 4
        %s210 = scalar_lea.vmem %s0, %s209
      $region40: #{tpu_custom_call.1} parent=35 // pred_fallthru
        _
    $region36: #{tpu_custom_call.1} parent=5 // pred_fallthru
      _
    %p211 = scmp.le.s32.totalorder 1, %s12
    %p212 = scmp.lt.s32.totalorder %s12, 3
    %p213 = pnand %p211, %p212
    %p214 = pneg %p213
    // Predicated region
    $region41: #{tpu_custom_call.1} parent=5 // pred_check
      _
    $region42: #{tpu_custom_call.1} parent=5 // pred_check_branch
      %216 = sbr.rel (%p213) target = $region44
    $region43: #{tpu_custom_call.1} parent=5 // pred_region
      %s217 = ssub.s32 %s12, 1
      %p218 = scmp.lt.s32.totalorder %s17, 1
      %s219 = scalar_select %p218, %s17, 1
      %s220 = smul.addr %s219, 2
      %s221 = smul.addr %s220, 4
      %s222 = scalar_lea.vmem %s0, %s221
      %p223 = pneg %p38
      %p224 = pneg %p35
      %p225 = pneg %p59
      %p226 = pneg %p56
      %p227 = pneg %p80
      %p228 = pneg %p77
      %p229 = pneg %p101
      %p230 = pneg %p98
      %p231 = pneg %p122
      %p232 = pneg %p119
      %p233 = pneg %p143
      %p234 = pneg %p140
      %p235 = pneg %p169
      %p236 = pneg %p166
      %p237 = scmp.lt.s32.totalorder %s17, 1
      %s238 = scalar_select %p237, %s17, 1
      %s239 = smul.addr %s238, 8
      %s240 = scalar_lea.vmem %s6, %s239
      %p241 = scmp.lt.s32.totalorder %s17, 1
      %s242 = scalar_select %p241, %s17, 1
      %s243 = smul.addr %s242, 2
      %s244 = smul.addr %s243, 4
      %s245 = scalar_lea.vmem %s0, %s244
      %p246 = scmp.lt.s32.totalorder %s17, 1
      %s247 = scalar_select %p246, %s17, 1
      %s248 = smul.addr %s247, 8
      %s249 = scalar_lea.vmem %s6, %s248
      %v250 = vld [vmem:[%s245] sm:$0xff]
      %v251 = vld [vmem:[%s1] sm:$0xff]
      %v252 = vld [vmem:[%s1 + $0x8] sm:$0xff]
      %v253 = vld [vmem:[%s1 + $0x10] sm:$0xff]
      %v254 = vld [vmem:[%s1 + $0x18] sm:$0xff]
      %v255 = vld [vmem:[%s1 + $0x20] sm:$0xff]
      %v256 = vld [vmem:[%s1 + $0x28] sm:$0xff]
      %v257 = vld [vmem:[%s1 + $0x30] sm:$0xff]
      %v258 = vld [vmem:[%s1 + $0x38] sm:$0xff]
      %v259 = vld [vmem:[%s1 + $0x40] sm:$0xff]
      %v260 = vld [vmem:[%s1 + $0x48] sm:$0xff]
      %v261 = vld [vmem:[%s1 + $0x50] sm:$0xff]
      %v262 = vld [vmem:[%s1 + $0x58] sm:$0xff]
      %v263 = vld [vmem:[%s1 + $0x60] sm:$0xff]
      %v264 = vld [vmem:[%s1 + $0x68] sm:$0xff]
      %v265 = vld [vmem:[%s1 + $0x70] sm:$0xff]
      %v266 = vld [vmem:[%s1 + $0x78] sm:$0xff]
      %v267 = vld [vmem:[%s1 + $0x80] sm:$0xff]
      %v268 = vld [vmem:[%s1 + $0x88] sm:$0xff]
      %v269 = vld [vmem:[%s1 + $0x90] sm:$0xff]
      %v270 = vld [vmem:[%s1 + $0x98] sm:$0xff]
      %v271 = vld [vmem:[%s1 + $0xa0] sm:$0xff]
      %v272 = vld [vmem:[%s1 + $0xa8] sm:$0xff]
      %v273 = vld [vmem:[%s1 + $0xb0] sm:$0xff]
      %v274 = vld [vmem:[%s1 + $0xb8] sm:$0xff]
      %v275 = vld [vmem:[%s3] sm:$0x1f]
      %v276 = vld [vmem:[%s4] sm:$0x1]
      %v277 = vld [vmem:[%s5] sm:$0x1]
      %v278 = vld [vmem:[%s2] sm:$0x1]
      %v279 = vadd.f32 %v278, %v275
      %v281 = vcombine.high %v250, %v250
      %v283 = vrot.slane %v275, 1
      %vm285 = vcmask 523264
      %v286 = vsel %vm285, %v281, 0
      %288 = vmatprep.subr.mxu0 0.0
      %289 = vmatpush1.msra.mxu0 %v251
      %290 = vmatprep.subr.mxu0 0.0
      %291 = vmatpush1.msra.mxu0 %v252
      %292 = vmatprep.subr.mxu0 0.0
      %293 = vmatpush1.msra.mxu0 %v253
      %294 = vmatprep.subr.mxu0 0.0
      %295 = vmatpush1.msra.mxu0 %v254
      %296 = vmatprep.subr.mxu0 0.0
      %297 = vmatpush1.msra.mxu0 %v255
      %298 = vmatprep.subr.mxu0 0.0
      %299 = vmatpush1.msra.mxu0 %v256
      %300 = vmatprep.subr.mxu0 0.0
      %301 = vmatpush1.msra.mxu0 %v257
      %302 = vmatprep.subr.mxu0 0.0
      %303 = vmatpush1.msra.mxu0 %v258
      %304 = vmatprep.subr.mxu0 0.0
      %305 = vmatpush1.msra.mxu0 %v259
      %306 = vmatprep.subr.mxu0 0.0
      %307 = vmatpush1.msra.mxu0 %v260
      %308 = vmatprep.subr.mxu0 0.0
      %309 = vmatpush1.msra.mxu0 %v261
      %310 = vmatprep.subr.mxu0 0.0
      %311 = vmatpush1.msra.mxu0 %v262
      %312 = vmatprep.subr.mxu0 0.0
      %313 = vmatpush1.msra.mxu0 %v263
      %314 = vmatprep.subr.mxu0 0.0
      %315 = vmatpush1.msra.mxu0 %v264
      %316 = vmatprep.subr.mxu0 0.0
      %317 = vmatpush1.msra.mxu0 %v265
      %318 = vmatprep.subr.mxu0 0.0
      %319 = vmatpush1.msra.mxu0 %v266
      %320 = vmatprep.subr.mxu0 0.0
      %321 = vmatpush1.msra.mxu0 %v267
      %322 = vmatprep.subr.mxu0 0.0
      %323 = vmatpush1.msra.mxu0 %v268
      %324 = vmatprep.subr.mxu0 0.0
      %325 = vmatpush1.msra.mxu0 %v269
      %326 = vmatprep.subr.mxu0 0.0
      %327 = vmatpush1.msra.mxu0 %v270
      %328 = vmatprep.subr.mxu0 0.0
      %329 = vmatpush1.msra.mxu0 %v271
      %330 = vmatprep.subr.mxu0 0.0
      %331 = vmatpush1.msra.mxu0 %v272
      %332 = vmatprep.subr.mxu0 0.0
      %333 = vmatpush1.msra.mxu0 %v273
      %334 = vmatprep.subr.mxu0 0.0
      %335 = vmatpush1.msra.mxu0 %v274
      %336 = vmatprep.subr.mxu0 0.0
      %337 = vmatpush1.msra.mxu0 0.0
      %338 = vmatprep.subr.mxu0 0.0
      %339 = vmatpush1.msra.mxu0 0.0
      %340 = vmatprep.subr.mxu0 0.0
      %341 = vmatpush1.msra.mxu0 0.0
      %342 = vmatprep.subr.mxu0 0.0
      %343 = vmatpush1.msra.mxu0 0.0
      %344 = vmatprep.subr.mxu0 0.0
      %345 = vmatpush1.msra.mxu0 0.0
      %346 = vmatprep.subr.mxu0 0.0
      %347 = vmatpush1.msra.mxu0 0.0
      %348 = vmatprep.subr.mxu0 0.0
      %349 = vmatpush1.msra.mxu0 0.0
      %350 = vmatprep.subr.mxu0 0.0
      %351 = vmatpush1.msra.mxu0 0.0
      %352 = vmatprep.mubr.f32.mxu0 %v286
      %353 = vmatmul.mubr.f32.gmra.mrb[0].mxu0 %v250
      %v354 = vpop.f32.mrb[0].mxu0
      %v355 = vadd.f32 %v283, %v354
      %v356 = vpop.f32.mrb[0].mxu0
      %357 = vdwg.mxu0
      %vm358 = vcmask 253952
      %v359 = vsel %vm358, %v279, 0.0
      %360 = vadd.xlane.f32.xlu0 %v359
      %v361 = vpop.xlane.xlu0 %360
      %v362 = vrcp.pop 32.0
      %v363 = vmul.f32 %v361, %v362
      %v364 = vsub.f32 %v279, %v363
      %v365 = vmul.f32 %v364, %v364
      %v366 = vsel %vm358, %v365, 0.0
      %367 = vadd.xlane.f32.xlu0 %v366
      %v368 = vpop.xlane.xlu0 %367
      %v369 = vmul.f32 %v368, %v362
      %v370 = vadd.f32 %v369, 1e-05
      %v371 = vrsqrt.pop %v370
      %v372 = vmul.f32 %v364, %v371
      %v373 = vmul.f32 %v372, %v276
      %v374 = vadd.f32 %v373, %v277
      %375 = vst.msk [vmem:[%s249] sm:$0x1] %vm358, %v374
      %vm376 = vcmask 257024
      %v377 = vsel %vm376, %v355, 0.0
      %378 = vadd.xlane.f32.xlu0 %v377
      %v379 = vpop.xlane.xlu0 %378
      %v380 = vmul.f32 %v379, %v362
      %v381 = vsub.f32 %v355, %v380
      %v382 = vmul.f32 %v381, %v381
      %v383 = vsel %vm376, %v382, 0.0
      %384 = vadd.xlane.f32.xlu0 %v383
      %v385 = vpop.xlane.xlu0 %384
      %v386 = vmul.f32 %v385, %v362
      %v387 = vadd.f32 %v386, 1e-05
      %v388 = vrsqrt.pop %v387
      %v389 = vmul.f32 %v381, %v388
      %v391 = vlaneseq
      %v392 = vshrl.u32 %v391, 7
      %v393 = vsub.s32 0, %v392
      %v394 = vrot.slane %v276, %v393
      %v396 = vmul.f32 %v389, %v394
      %v398 = vlaneseq
      %v399 = vshrl.u32 %v398, 7
      %v400 = vsub.s32 0, %v399
      %v401 = vrot.slane %v277, %v400
      %v403 = vadd.f32 %v396, %v401
      %404 = vst.msk [vmem:[%s249 + $0x1] sm:$0xf] %vm376, %v403
      %p405 = scmp.lt.s32.totalorder %s17, 1
      %s406 = scalar_select %p405, %s17, 1
      %s407 = smul.addr %s406, 8
      %s408 = scalar_lea.vmem %s6, %s407
      // Predicated region
      $region45: #{tpu_custom_call.1} parent=43 // pred_check
        %p409 = pneg %p166
      $region46: #{tpu_custom_call.1} parent=43 // pred_check_branch
        %411 = sbr.rel (%p409) target = $region48
      $region47: #{tpu_custom_call.1} parent=43 // pred_region
        _
      $region48: #{tpu_custom_call.1} parent=43 // pred_fallthru
        _
    $region44: #{tpu_custom_call.1} parent=5 // pred_fallthru
      _
    %p412 = scmp.le.s32.totalorder 2, %s12
    // Predicated region
    $region49: #{tpu_custom_call.1} parent=5 // pred_check
      %p413 = pneg %p412
    $region50: #{tpu_custom_call.1} parent=5 // pred_check_branch
      %415 = sbr.rel (%p413) target = $region52
    $region51: #{tpu_custom_call.1} parent=5 // pred_region
      %s416 = ssub.s32 %s12, 2
      // Predicated region
      $region53: #{tpu_custom_call.1} parent=51 // pred_check
        %p417 = pneg %p172
      $region54: #{tpu_custom_call.1} parent=51 // pred_check_branch
        %419 = sbr.rel (%p417) target = $region56
      $region55: #{tpu_custom_call.1} parent=51 // pred_region
        %p420 = scmp.lt.s32.totalorder %s18, 1
        %s421 = scalar_select %p420, %s18, 1
        %s422 = smul.addr %s421, 8
        %s423 = scalar_lea.vmem %s6, %s422
      $region56: #{tpu_custom_call.1} parent=51 // pred_fallthru
        _
    $region52: #{tpu_custom_call.1} parent=5 // pred_fallthru
      _
  $region6: #{tpu_custom_call.1} parent=0 // loop_footer
    %s16 = sadd.s32 1, %s12
  $region7: #{tpu_custom_call.1} parent=0 // loop_footer_branch
    %11 = sbr.rel target = $region3
  $region8: #{tpu_custom_call.1} parent=0 // loop_exit
    _

</llo_original>
